<compile_context>
chip_gen: v7x
topology: tpu7x:2x2x1
jax: 0.10.0
libtpu: 0.0.40
codegen_flags: <defaults>
</compile_context>

<pallas_src>
import jax
import jax.numpy as jnp
from jax import lax
from jax.experimental import pallas as pl
from jax.experimental.pallas import tpu as pltpu


# ------------------------------- helpers -----------------------------------

def _round_up(x, m):
    return (x + m - 1) // m * m


def _vmem_capacity_bytes():
    """Physical VMEM of the attached TPU (conservative 64 MiB if unknown)."""
    try:
        info = pltpu.get_tpu_info()
        cap = getattr(info, "vmem_capacity_bytes", None)
        if cap:
            return int(cap)
    except Exception:
        pass
    return 64 * 1024 * 1024


def _ensure_two_grid_steps(n, tile_n, align):
    """v7x has 2 TensorCores: a single-step 'parallel' grid leaves one idle."""
    if n > align and _round_up(n, tile_n) == tile_n:
        return max(align, _round_up(pl.cdiv(n, 2), align))
    return tile_n


# ----------------------- path 1: one-hot MXU matmul ------------------------

def _onehot_gather_kernel(ids_ref, table_ref, out_ref):
    """ids_ref: VMEM (TN,1) i32; table_ref: VMEM (V, C*D) bf16; out_ref: (TN, D)."""
    tn, d = out_ref.shape
    v, cd = table_ref.shape
    n_chunks = cd // d
    ids = ids_ref[...]                                    # (TN, 1)
    iota = lax.broadcasted_iota(jnp.int32, (tn, v), 1)    # (TN, V)
    onehot = (iota == ids).astype(jnp.bfloat16)           # exact 0/1, MXU-native
    # Single-pass bf16 matmul: per output element exactly one non-zero product,
    # so the f32 accumulator holds each bf16 table chunk bit-exactly.
    r = jnp.dot(onehot, table_ref[...], preferred_element_type=jnp.float32)
    acc = r[:, :d]
    for c in range(1, n_chunks):                          # exact f32 reconstruction
        acc = acc + r[:, c * d:(c + 1) * d]
    out_ref[...] = acc.astype(out_ref.dtype)


def _bf16_chunk_table(table):
    """f32 table -> (V, 3D) bf16 hi/mid/lo chunks whose sum is exactly the f32
    value; a bf16 table passes through unchanged (single chunk)."""
    if table.dtype == jnp.bfloat16:
        return table
    assert table.dtype == jnp.float32
    hi = table.astype(jnp.bfloat16)
    r1 = table - hi.astype(jnp.float32)                   # exact residual
    mid = r1.astype(jnp.bfloat16)
    lo = (r1 - mid.astype(jnp.float32)).astype(jnp.bfloat16)  # fits bf16 exactly
    return jnp.concatenate([hi, mid, lo], axis=1)


_single_buffer_table_ok = True  # flipped off if this jax rejects pl.Buffered(1)


def _onehot_pallas_call(ids_2d, table_prep, out_dtype, d, tile_n, vmem_limit,
                        single_buffer_table):
    n_pad = ids_2d.shape[0]
    v, cd = table_prep.shape
    spec_kwargs = {"pipeline_mode": pl.Buffered(1)} if single_buffer_table else {}
    table_spec = pl.BlockSpec((v, cd), lambda i: (0, 0), **spec_kwargs)
    return pl.pallas_call(
        _onehot_gather_kernel,
        out_shape=jax.ShapeDtypeStruct((n_pad, d), out_dtype),
        grid=(n_pad // tile_n,),
        in_specs=[pl.BlockSpec((tile_n, 1), lambda i: (i, 0)), table_spec],
        out_specs=pl.BlockSpec((tile_n, d), lambda i: (i, 0)),
        compiler_params=pltpu.CompilerParams(
            dimension_semantics=("parallel",),
            vmem_limit_bytes=vmem_limit),
    )(ids_2d, table_prep)


def _embed_onehot(ids_flat, table, tile_n, vmem_limit):
    global _single_buffer_table_ok
    n_pad = ids_flat.shape[0]
    d = table.shape[1]
    ids_2d = ids_flat.reshape(n_pad, 1)
    table_prep = _bf16_chunk_table(table)   # in a real model: precompute once
    if _single_buffer_table_ok:
        try:
            return jax.block_until_ready(
                _onehot_pallas_call(ids_2d, table_prep, table.dtype, d, tile_n,
                                    vmem_limit, True))
        except Exception:
            _single_buffer_table_ok = False   # fall back to default buffering
    return _onehot_pallas_call(ids_2d, table_prep, table.dtype, d, tile_n,
                               vmem_limit, False)


# -------------- path 2: HBM-resident table, manual DMA gather --------------

_GATHER_SLOTS = 4   # row-group buffers; up to _GATHER_SLOTS-1 groups in flight


def _hbm_gather_kernel(ids_ref, table_hbm, out_ref, row_buf, sem):
    """ids_ref: SMEM (Np,) i32 (scalar prefetch); table_hbm: HBM (V,D);
    out_ref: VMEM (TN,D); row_buf: VMEM (SLOTS,ROWS,D); sem: DMA (SLOTS,ROWS)."""
    tn = out_ref.shape[0]
    slots, rows, _ = row_buf.shape
    base = pl.program_id(0) * tn
    n_groups = tn // rows                                  # static

    def fetch_group(g, slot):
        for j in range(rows):
            row = ids_ref[base + g * rows + j]
            pltpu.make_async_copy(
                table_hbm.at[row], row_buf.at[slot, j], sem.at[slot, j]).start()

    def wait_group(slot):
        for j in range(rows):
            # Only the dst slice + semaphore matter for the wait; the dst slice
            # is identical to the one used in fetch_group (fixed src row 0).
            pltpu.make_async_copy(
                table_hbm.at[0], row_buf.at[slot, j], sem.at[slot, j]).wait()

    # Prime slots-1 groups so the steady-state loop keeps that many in flight.
    for p in range(min(slots - 1, n_groups)):
        fetch_group(p, p)

    def body(g, carry):
        slot = g % slots
        nxt = g + (slots - 1)

        # Issue the next group's DMAs BEFORE waiting on the current one: the
        # SMEM id reads stay ahead of .wait() and the copies overlap the wait,
        # the store below and the following iterations.
        @pl.when(nxt < n_groups)
        def _():
            fetch_group(nxt, nxt % slots)

        wait_group(slot)
        start = pl.multiple_of(g * rows, rows)
        out_ref[pl.ds(start, rows), :] = row_buf[slot]     # one full-vreg store
        return carry

    lax.fori_loop(0, n_groups, body, 0, unroll=2)


def _embed_hbm(ids_flat, table, tile_n, rows):
    n_pad = ids_flat.shape[0]
    v, d = table.shape
    return pl.pallas_call(
        _hbm_gather_kernel,
        out_shape=jax.ShapeDtypeStruct((n_pad, d), table.dtype),
        grid_spec=pltpu.PrefetchScalarGridSpec(
            num_scalar_prefetch=1,                          # ids -> SMEM
            grid=(n_pad // tile_n,),
            in_specs=[pl.BlockSpec(memory_space=pl.ANY)],   # table stays in HBM
            out_specs=pl.BlockSpec((tile_n, d), lambda i, ids: (i, 0)),
            scratch_shapes=[
                pltpu.VMEM((_GATHER_SLOTS, rows, d), table.dtype),
                pltpu.SemaphoreType.DMA((_GATHER_SLOTS, rows)),
            ],
        ),
        compiler_params=pltpu.CompilerParams(
            dimension_semantics=("parallel",)),
    )(ids_flat, table)


# ------------------------------- dispatcher --------------------------------

_ONEHOT_MAX_VOCAB = 4096   # beyond this the (TN, V) one-hot matmul stops paying


def _embed_tokens(ids_flat, table, *, force_hbm_gather=False):
    n = ids_flat.shape[0]
    v, d = table.shape
    # Clamp so a bad token id can never read OOB rows (no runtime check on TPU).
    ids_flat = jnp.clip(ids_flat.astype(jnp.int32), 0, v - 1)

    vmem_cap = _vmem_capacity_bytes()
    big_vmem = vmem_cap >= 96 * 1024 * 1024               # v5e / v6e (128 MiB)
    table_cap = (24 if big_vmem else 8) * 1024 * 1024     # resident-table budget
    onehot_cap = (4 if big_vmem else 2) * 1024 * 1024     # (TN, V) bf16 temp cap

    # One-hot MXU gather needs a float table (v7x MXU has no integer datapath)
    # that fits the VMEM budget once split into exact bf16 chunks.
    n_chunks = 3 if table.dtype == jnp.float32 else 1
    prep_bytes = v * n_chunks * d * 2
    use_onehot = (not force_hbm_gather
                  and table.dtype in (jnp.float32, jnp.bfloat16)
                  and v <= _ONEHOT_MAX_VOCAB
                  and prep_bytes <= table_cap)

    if use_onehot:
        max_tile_oh = max(8, (onehot_cap // (v * 2)) // 8 * 8)
        max_tile_out = max(8, ((4 * 1024 * 1024) // (d * 4)) // 8 * 8)
        tile_n = min(512, max_tile_oh, max_tile_out, _round_up(n, 8))
        tile_n = _ensure_two_grid_steps(n, tile_n, 8)
        n_pad = _round_up(n, tile_n)
        if n_pad != n:
            ids_flat = jnp.pad(ids_flat, (0, n_pad - n))  # pad with id 0 (in range)
        # VMEM budget: table (worst case 2 buffers), one-hot + f32 result temps,
        # double-buffered ids / out tiles, headroom.
        need = (2 * prep_bytes + 2 * tile_n * v * 2 + tile_n * n_chunks * d * 4
                + 2 * tile_n * 128 * 4 + 2 * tile_n * d * table.dtype.itemsize
                + (8 << 20))
        vmem_limit = int(min(max(need, 32 << 20), vmem_cap - (8 << 20)))
        out = _embed_onehot(ids_flat, table, tile_n, vmem_limit)
    else:
        rows = max(8, 32 // table.dtype.itemsize)          # one packed vreg/store
        tile_n = min(256, _round_up(n, rows))
        tile_n = _ensure_two_grid_steps(n, tile_n, rows)
        n_pad = _round_up(n, tile_n)
        if n_pad != n:
            ids_flat = jnp.pad(ids_flat, (0, n_pad - n))
        out = _embed_hbm(ids_flat, table, tile_n, rows)
    return out[:n]


def word_rep_forward(sentence, elmo_tensor, word_embed_table, use_elmo=0):
    """JAX equivalent of WordRep.forward((sentence, elmo_tensor, ...))."""
    b, s = sentence.shape
    _, d = word_embed_table.shape
    words_embeds = _embed_tokens(
        sentence.reshape(-1), word_embed_table).reshape(b, s, d)

    # elmo branches are pure reshape/concat glue and stay in plain JAX.
    if use_elmo == 1:
        # torch: elmo_tensor.view(B, 1, -1) then cat along dim=-1 (requires S==1,
        # same contract as the original module).
        elmo = elmo_tensor.reshape(elmo_tensor.shape[0], 1, -1)
        words_embeds = jnp.concatenate([words_embeds, elmo], axis=-1)
    elif use_elmo == 2:
        words_embeds = elmo_tensor.reshape(elmo_tensor.shape[0], 1, -1)
    return words_embeds


if __name__ == "__main__":
    key = jax.random.PRNGKey(0)
    k_emb, k_sent, k_elmo = jax.random.split(key, 3)

    vocab_size = 64
    word_embed_dim = 128
    batch = 2
    seq = 8
    elmo_dim = 256

    word_embed_table = jax.random.normal(
        k_emb, (vocab_size, word_embed_dim), dtype=jnp.float32)
    sentence = jax.random.randint(
        k_sent, (batch, seq), 0, vocab_size, dtype=jnp.int32)
    elmo_tensor = jax.random.normal(
        k_elmo, (batch, elmo_dim), dtype=jnp.float32)

    ref = word_embed_table[sentence]

    # 1) Default path (small vocab -> one-hot MXU matmul, exact f32 via bf16
    #    hi/mid/lo chunks), use_elmo = 0.
    out = jax.block_until_ready(
        word_rep_forward(sentence, elmo_tensor, word_embed_table, use_elmo=0))
    assert out.shape == (batch, seq, word_embed_dim)
    assert jnp.allclose(out, ref, rtol=1e-6, atol=1e-6)

    # 1b) bf16 table exercises the single-pass branch of the one-hot kernel.
    table_bf16 = word_embed_table.astype(jnp.bfloat16)
    out_bf16 = jax.block_until_ready(
        _embed_tokens(sentence.reshape(-1), table_bf16)
        .reshape(batch, seq, word_embed_dim))
    assert jnp.allclose(out_bf16.astype(jnp.float32),
                        table_bf16[sentence].astype(jnp.float32))

    # 2) Large-vocab path (table stays in HBM, deep double-buffered DMA gather),
    #    forced here so the small test shapes still exercise it.
    out_hbm = jax.block_until_ready(
        _embed_tokens(sentence.reshape(-1), word_embed_table,
                      force_hbm_gather=True)
        .reshape(batch, seq, word_embed_dim))
    assert jnp.allclose(out_hbm, ref)

    # 3) use_elmo = 2 path (elmo replaces word embeddings) -- pure glue.
    out2 = jax.block_until_ready(
        word_rep_forward(sentence, elmo_tensor, word_embed_table, use_elmo=2))
    assert out2.shape == (batch, 1, elmo_dim)

    # 4) use_elmo = 1 path (concat; requires seq == 1, as in the torch module).
    out1 = jax.block_until_ready(
        word_rep_forward(sentence[:, :1], elmo_tensor, word_embed_table,
                         use_elmo=1))
    assert out1.shape == (batch, 1, word_embed_dim + elmo_dim)

    print("KERNEL_OK")
</pallas_src>

<mosaic_0001>
module attributes {stable_mosaic.version = 11 : i64} {
  func.func @_onehot_gather_kernel(%arg0: i32, %arg1: memref<8x1xi32, #tpu.memory_space<vmem>>, %arg2: memref<64x384xbf16, #tpu.memory_space<vmem>>, %arg3: memref<8x128xf32, #tpu.memory_space<vmem>>) attributes {dimension_semantics = [#tpu.dimension_semantics<parallel>], iteration_bounds = array<i64: 2>, scalar_prefetch = 0 : i64, scratch_operands = 0 : i64, tpu.core_type = #tpu.core_type<tc>, window_params = [{transform_indices = @transform_0, window_bounds = array<i64: 8, 1>}, {pipeline_mode = #tpu.pipeline_mode<synchronous>, transform_indices = @transform_1, window_bounds = array<i64: 64, 384>}, {transform_indices = @transform_2, window_bounds = array<i64: 8, 128>}]} {
    %c0 = arith.constant 0 : index
    %c0_0 = arith.constant 0 : index
    %0 = vector.load %arg1[%c0, %c0_0] : memref<8x1xi32, #tpu.memory_space<vmem>>, vector<8x1xi32>
    %1 = tpu.iota {dimensions = array<i32: 1>} : vector<8x64xi32>
    %2 = vector.broadcast %0 : vector<8x1xi32> to vector<8x64xi32>
    %3 = arith.cmpi eq, %1, %2 : vector<8x64xi32>
    %4 = arith.extui %3 : vector<8x64xi1> to vector<8x64xi32>
    %5 = arith.sitofp %4 : vector<8x64xi32> to vector<8x64xf32>
    %6 = arith.truncf %5 : vector<8x64xf32> to vector<8x64xbf16>
    %c0_1 = arith.constant 0 : index
    %c0_2 = arith.constant 0 : index
    %7 = vector.load %arg2[%c0_1, %c0_2] : memref<64x384xbf16, #tpu.memory_space<vmem>>, vector<64x384xbf16>
    %cst = arith.constant dense<0.000000e+00> : vector<8x384xf32>
    %8 = tpu.matmul %6, %7, %cst {dimension_numbers = #tpu.dot_dimension_numbers<[1], [0], [0], [1], [0, 0, 1, 1], [], []>} : vector<8x64xbf16>, vector<64x384xbf16>, vector<8x384xf32> -> vector<8x384xf32>
    %9 = vector.extract_strided_slice %8 {offsets = [0, 0], sizes = [8, 128], strides = [1, 1]} : vector<8x384xf32> to vector<8x128xf32>
    %10 = vector.extract_strided_slice %8 {offsets = [0, 128], sizes = [8, 128], strides = [1, 1]} : vector<8x384xf32> to vector<8x128xf32>
    %11 = arith.addf %9, %10 : vector<8x128xf32>
    %12 = vector.extract_strided_slice %8 {offsets = [0, 256], sizes = [8, 128], strides = [1, 1]} : vector<8x384xf32> to vector<8x128xf32>
    %13 = arith.addf %11, %12 : vector<8x128xf32>
    %c0_3 = arith.constant 0 : index
    %c0_4 = arith.constant 0 : index
    %14 = vector.load %arg3[%c0_3, %c0_4] : memref<8x128xf32, #tpu.memory_space<vmem>>, vector<8x128xf32>
    tpu.vector_store %arg3[%c0_3, %c0_4], %13 {strides = array<i32>} : memref<8x128xf32, #tpu.memory_space<vmem>>, vector<8x128xf32>,
    return
  }
  func.func @transform_0(%arg0: i32) -> (i32, i32) {
    %c0_i32 = arith.constant 0 : i32
    %c0_i32_0 = arith.constant 0 : i32
    return %arg0, %c0_i32 : i32, i32
  }
  func.func @transform_1(%arg0: i32) -> (i32, i32) {
    %c0_i32 = arith.constant 0 : i32
    %c0_i32_0 = arith.constant 0 : i32
    %c0_i32_1 = arith.constant 0 : i32
    return %c0_i32, %c0_i32_0 : i32, i32
  }
  func.func @transform_2(%arg0: i32) -> (i32, i32) {
    %c0_i32 = arith.constant 0 : i32
    %c0_i32_0 = arith.constant 0 : i32
    return %arg0, %c0_i32 : i32, i32
  }
}

module attributes {stable_mosaic.version = 11 : i64} {
  func.func @_onehot_gather_kernel(%arg0: i32, %arg1: memref<8x1xi32, #tpu.memory_space<vmem>>, %arg2: memref<64x384xbf16, #tpu.memory_space<vmem>>, %arg3: memref<8x128xf32, #tpu.memory_space<vmem>>) attributes {dimension_semantics = [#tpu.dimension_semantics<parallel>], iteration_bounds = array<i64: 2>, scalar_prefetch = 0 : i64, scratch_operands = 0 : i64, tpu.core_type = #tpu.core_type<tc>, window_params = [{transform_indices = @transform_0, window_bounds = array<i64: 8, 1>}, {pipeline_mode = #tpu.pipeline_mode<synchronous>, transform_indices = @transform_1, window_bounds = array<i64: 64, 384>}, {transform_indices = @transform_2, window_bounds = array<i64: 8, 128>}]} {
    %c0 = arith.constant 0 : index
    %c0_0 = arith.constant 0 : index
    %0 = vector.load %arg1[%c0, %c0_0] : memref<8x1xi32, #tpu.memory_space<vmem>>, vector<8x1xi32>
    %1 = tpu.iota {dimensions = array<i32: 1>} : vector<8x64xi32>
    %2 = vector.broadcast %0 : vector<8x1xi32> to vector<8x64xi32>
    %3 = arith.cmpi eq, %1, %2 : vector<8x64xi32>
    %4 = arith.extui %3 : vector<8x64xi1> to vector<8x64xi32>
    %5 = arith.sitofp %4 : vector<8x64xi32> to vector<8x64xf32>
    %6 = arith.truncf %5 : vector<8x64xf32> to vector<8x64xbf16>
    %c0_1 = arith.constant 0 : index
    %c0_2 = arith.constant 0 : index
    %7 = vector.load %arg2[%c0_1, %c0_2] : memref<64x384xbf16, #tpu.memory_space<vmem>>, vector<64x384xbf16>
    %cst = arith.constant dense<0.000000e+00> : vector<8x384xf32>
    %8 = tpu.matmul %6, %7, %cst {dimension_numbers = #tpu.dot_dimension_numbers<[1], [0], [0], [1], [0, 0, 1, 1], [], []>} : vector<8x64xbf16>, vector<64x384xbf16>, vector<8x384xf32> -> vector<8x384xf32>
    %9 = vector.extract_strided_slice %8 {offsets = [0, 0], sizes = [8, 128], strides = [1, 1]} : vector<8x384xf32> to vector<8x128xf32>
    %10 = vector.extract_strided_slice %8 {offsets = [0, 128], sizes = [8, 128], strides = [1, 1]} : vector<8x384xf32> to vector<8x128xf32>
    %11 = arith.addf %9, %10 : vector<8x128xf32>
    %12 = vector.extract_strided_slice %8 {offsets = [0, 256], sizes = [8, 128], strides = [1, 1]} : vector<8x384xf32> to vector<8x128xf32>
    %13 = arith.addf %11, %12 : vector<8x128xf32>
    %c0_3 = arith.constant 0 : index
    %c0_4 = arith.constant 0 : index
    %14 = vector.load %arg3[%c0_3, %c0_4] : memref<8x128xf32, #tpu.memory_space<vmem>>, vector<8x128xf32>
    tpu.vector_store %arg3[%c0_3, %c0_4], %13 {strides = array<i32>} : memref<8x128xf32, #tpu.memory_space<vmem>>, vector<8x128xf32>,
    return
  }
  func.func @transform_0(%arg0: i32) -> (i32, i32) {
    %c0_i32 = arith.constant 0 : i32
    %c0_i32_0 = arith.constant 0 : i32
    return %arg0, %c0_i32 : i32, i32
  }
  func.func @transform_1(%arg0: i32) -> (i32, i32) {
    %c0_i32 = arith.constant 0 : i32
    %c0_i32_0 = arith.constant 0 : i32
    %c0_i32_1 = arith.constant 0 : i32
    return %c0_i32, %c0_i32_0 : i32, i32
  }
  func.func @transform_2(%arg0: i32) -> (i32, i32) {
    %c0_i32 = arith.constant 0 : i32
    %c0_i32_0 = arith.constant 0 : i32
    return %arg0, %c0_i32 : i32, i32
  }
}

</mosaic_0001>

<llo_original>
// kernel: tpu_custom_call.1
$region0: #{tpu_custom_call.1}
  #allocation0 [shape = 'u32[]', space=smem, size = 0x4, offset = 0x4, fixed_abs, tag = 'smem constant byte address 0x4 - core index']
  #allocation1 [shape = 'u32[144,128]{1,0:T(1,128)}', space=vmem, size = 0x12000, scoped, tag = 'internal scratch']
  %s0 = inlined_call_operand.vmem [shape: s32[16,1], index: 0, kind: input, shape index: {}]
  %s1 = inlined_call_operand.hbm [shape: bf16[64,384], index: 1, kind: input, shape index: {}]
  %s2 = inlined_call_operand.hbm [shape: f32[16,128], index: 2, kind: output, shape index: {}]
  %s3 = sld [smem:[#allocation0]]
  $region45: #{tpu_custom_call.1} parent=0
    _
  %s5 = ssub.s32 1, %s3
  %s6 = scalar_select 0, %s5, %s3
  $region1: #{tpu_custom_call.1} parent=0
    #allocation2 [shape = 'u8[49152]{0}', space=vmem, size = 0xc000, scoped, tag = 'input window, operand 1, single buffered']
    #allocation3 [shape = 's32[2]{0}', space=sflag, size = 0x8, scoped, tag = 'scoped memory for tpu_custom_call.1']
    #allocation4 [shape = 's32[2]{0}', space=sflag, size = 0x8, scoped, tag = 'scoped memory for tpu_custom_call.1']
    #allocation5 [shape = 'u8[8192]{0}', space=vmem, size = 0x2000, scoped, tag = 'output window, operand 0']
    %7 = vsyncpa [#allocation3], 0
    %8 = vsyncpa [#allocation4], 0
    %s9 = scalar_lea.sflag [#allocation4], 1
    %10 = vsyncpa %s9, 0
    loop: start=0, step=1, limit=4
    $region2: #{tpu_custom_call.1} parent=1 // loop_pre_header
      _
    $region3: #{tpu_custom_call.1} parent=1 // loop_header
      %s12 = sphi 0, %s16
      %p13 = scmp.ge.s32.totalorder %s12, 4
      %s22 = sphi 0, %s24
      %s25 = sphi 0, %s22
      %s26 = sphi 0, %s25
      %s42 = sphi 0, %s26
      %s46 = sphi 0, %s46
      %s48 = sphi 0, %s46
      %s49 = sphi 0, %s48
      %s63 = sphi 0, %s49
      %s69 = sphi 0, %s71
      %s72 = sphi 0, %s69
      %s73 = sphi 0, %s72
      %s89 = sphi 0, %s73
    $region4: #{tpu_custom_call.1} parent=1 // loop_header_branch
      %15 = sbr.rel (%p13) target = $region8
    $region5: #{tpu_custom_call.1} parent=1 // loop_body
      %s17 = ssub.s32 %s12, 1
      %s18 = ssub.s32 %s12, 2
      %s19 = sadd.s32 %s12, 1
      %s20 = ssub.s32 %s12, %s19
      %p21 = scmp.eq.s32.totalorder %s20, 0
      %s23 = sadd.s32 %s22, 1
      %s24 = scalar_select %p21, %s22, %s23
      %p27 = pneg %p21
      %p28 = scmp.eq.s32.totalorder %s12, 1
      %p29 = por %p27, %p28
      %p30 = scmp.ne.s32.totalorder %s22, %s25
      %p31 = scmp.eq.s32.totalorder %s12, 0
      %p32 = por %p30, %p31
      %p33 = scmp.ne.s32.totalorder %s22, %s25
      %p34 = scmp.eq.s32.totalorder %s17, 1
      %p35 = por %p33, %p34
      %p36 = scmp.ne.s32.totalorder %s25, %s26
      %p37 = scmp.eq.s32.totalorder %s17, 0
      %p38 = por %p36, %p37
      %p39 = scmp.ne.s32.totalorder %s25, %s26
      %p40 = scmp.eq.s32.totalorder %s18, 1
      %p41 = por %p39, %p40
      %p43 = scmp.ne.s32.totalorder %s26, %s42
      %p44 = scmp.eq.s32.totalorder %s18, 0
      %p45 = por %p43, %p44
      %s47 = sadd.s32 %s46, 1
      %p50 = scmp.eq.s32.totalorder %s12, 1
      %p51 = scmp.ne.s32.totalorder %s46, %s48
      %p52 = scmp.eq.s32.totalorder %s12, 0
      %p53 = por %p51, %p52
      %p54 = scmp.ne.s32.totalorder %s46, %s48
      %p55 = scmp.eq.s32.totalorder %s17, 1
      %p56 = por %p54, %p55
      %p57 = scmp.ne.s32.totalorder %s48, %s49
      %p58 = scmp.eq.s32.totalorder %s17, 0
      %p59 = por %p57, %p58
      %p60 = scmp.ne.s32.totalorder %s48, %s49
      %p61 = scmp.eq.s32.totalorder %s18, 1
      %p62 = por %p60, %p61
      %p64 = scmp.ne.s32.totalorder %s49, %s63
      %p65 = scmp.eq.s32.totalorder %s18, 0
      %p66 = por %p64, %p65
      %s67 = ssub.s32 %s12, %s19
      %p68 = scmp.eq.s32.totalorder %s67, 0
      %s70 = sadd.s32 %s69, 1
      %s71 = scalar_select %p68, %s69, %s70
      %p74 = pneg %p68
      %p75 = scmp.eq.s32.totalorder %s12, 1
      %p76 = por %p74, %p75
      %p77 = scmp.ne.s32.totalorder %s69, %s72
      %p78 = scmp.eq.s32.totalorder %s12, 0
      %p79 = por %p77, %p78
      %p80 = scmp.ne.s32.totalorder %s69, %s72
      %p81 = scmp.eq.s32.totalorder %s17, 1
      %p82 = por %p80, %p81
      %p83 = scmp.ne.s32.totalorder %s72, %s73
      %p84 = scmp.eq.s32.totalorder %s17, 0
      %p85 = por %p83, %p84
      %p86 = scmp.ne.s32.totalorder %s72, %s73
      %p87 = scmp.eq.s32.totalorder %s18, 1
      %p88 = por %p86, %p87
      %p90 = scmp.ne.s32.totalorder %s73, %s89
      %p91 = scmp.eq.s32.totalorder %s18, 0
      %p92 = por %p90, %p91
      %p93 = scmp.le.s32.totalorder 1, %s12
      %p94 = scmp.lt.s32.totalorder %s12, 3
      %p95 = pnand %p93, %p94
      %p96 = pneg %p95
      // Predicated region
      $region9: #{tpu_custom_call.1} parent=5 // pred_check
        _
      $region10: #{tpu_custom_call.1} parent=5 // pred_check_branch
        %98 = sbr.rel (%p95) target = $region12
      $region11: #{tpu_custom_call.1} parent=5 // pred_region
        %s99 = ssub.s32 %s12, 1
        // Predicated region
        $region13: #{tpu_custom_call.1} parent=11 // pred_check
          %p100 = pneg %p59
        $region14: #{tpu_custom_call.1} parent=11 // pred_check_branch
          %102 = sbr.rel (%p100) target = $region16
        $region15: #{tpu_custom_call.1} parent=11 // pred_region
          %s104 = ssub.s32 1536, 1536
          %105 = vsyncadd [#allocation3], %s104
          %s106 = sshll.u32 [#allocation2], 4
          %s107 = int_to_ptr.vmem [resolvable:$true] %s106
          %112 = dma.hbm_to_vmem [thread:$0]  %s1, 1536, %s107, [#allocation3], 192, 192, 12
        $region16: #{tpu_custom_call.1} parent=11 // pred_fallthru
          _
      $region12: #{tpu_custom_call.1} parent=5 // pred_fallthru
        _
      %p113 = scmp.lt.s32.totalorder %s12, 2
      // Predicated region
      $region17: #{tpu_custom_call.1} parent=5 // pred_check
        %p114 = pneg %p113
      $region18: #{tpu_custom_call.1} parent=5 // pred_check_branch
        %116 = sbr.rel (%p114) target = $region20
      $region19: #{tpu_custom_call.1} parent=5 // pred_region
        // Predicated region
        $region21: #{tpu_custom_call.1} parent=19 // pred_check
          %p117 = pneg %p32
        $region22: #{tpu_custom_call.1} parent=19 // pred_check_branch
          %119 = sbr.rel (%p117) target = $region24
        $region23: #{tpu_custom_call.1} parent=19 // pred_region
          %p120 = scmp.lt.s32.totalorder %s12, 1
          %s121 = scalar_select %p120, %s12, 1
          %s122 = smul.addr %s121, 8
          %s123 = scalar_lea.vmem %s0, %s122
        $region24: #{tpu_custom_call.1} parent=19 // pred_fallthru
          _
      $region20: #{tpu_custom_call.1} parent=5 // pred_fallthru
        _
      %p124 = scmp.le.s32.totalorder 1, %s12
      %p125 = scmp.lt.s32.totalorder %s12, 3
      %p126 = pnand %p124, %p125
      %p127 = pneg %p126
      // Predicated region
      $region25: #{tpu_custom_call.1} parent=5 // pred_check
        _
      $region26: #{tpu_custom_call.1} parent=5 // pred_check_branch
        %129 = sbr.rel (%p126) target = $region28
      $region27: #{tpu_custom_call.1} parent=5 // pred_region
        %s130 = ssub.s32 %s12, 1
        // Predicated region
        $region29: #{tpu_custom_call.1} parent=27 // pred_check
          %p131 = pneg %p59
        $region30: #{tpu_custom_call.1} parent=27 // pred_check_branch
          %133 = sbr.rel (%p131) target = $region32
        $region31: #{tpu_custom_call.1} parent=27 // pred_region
          %134 = dma.done [#allocation3], 1536
        $region32: #{tpu_custom_call.1} parent=27 // pred_fallthru
          _
        %p135 = scmp.lt.s32.totalorder %s17, 1
        %s136 = scalar_select %p135, %s17, 1
        %s137 = smul.addr %s136, 8
        %s138 = scalar_lea.vmem %s0, %s137
        %p139 = pneg %p38
        %p140 = pneg %p35
        %p141 = pneg %p59
        %p142 = pneg %p56
        %p143 = pneg %p85
        %p144 = pneg %p82
        %s145 = sand.u32 %s72, 1
        %s146 = scalar_lea.sflag [#allocation4], %s145
        %s147 = sand.u32 %s72, 1
        %s148 = smul.addr %s147, 8
        %s149 = scalar_lea.vmem [#allocation5], %s148
        %p150 = scmp.lt.s32.totalorder %s17, 1
        %s151 = scalar_select %p150, %s17, 1
        %s152 = smul.addr %s151, 8
        %s153 = scalar_lea.vmem %s0, %s152
        %v155 = vld [vmem:[%s153] sm:$0xff]
        %v156 = vlaneseq
        %v157 = vand.u32 %v156, 127
        %158 = vset.pattern.permute.xlu0 0
        %159 = vperm.xlu0 %158, %v155
        %v160 = vpop.permute.xlu0 %159
        %vm161 = vcmp.eq.s32.totalorder %v157, %v160
        %v162 = vsel %vm161, 1, 0
        %v163 = vcvt.s32.f32 %v162
        %v164 = vpack.c.bf16 %v163, %v163
        %v165 = vld [vmem:[#allocation2] sm:$0xff]
        %v166 = vld [vmem:[#allocation2 + $0x8] sm:$0xf]
        %v167 = vld [vmem:[#allocation2 + $0xc] sm:$0xff]
        %v168 = vld [vmem:[#allocation2 + $0x14] sm:$0xf]
        %v169 = vld [vmem:[#allocation2 + $0x18] sm:$0xff]
        %v170 = vld [vmem:[#allocation2 + $0x20] sm:$0xf]
        %v171 = vld [vmem:[#allocation2 + $0x24] sm:$0xff]
        %v172 = vld [vmem:[#allocation2 + $0x2c] sm:$0xf]
        %v173 = vld [vmem:[#allocation2 + $0x30] sm:$0xff]
        %v174 = vld [vmem:[#allocation2 + $0x38] sm:$0xf]
        %v175 = vld [vmem:[#allocation2 + $0x3c] sm:$0xff]
        %v176 = vld [vmem:[#allocation2 + $0x44] sm:$0xf]
        %v177 = vld [vmem:[#allocation2 + $0x48] sm:$0xff]
        %v178 = vld [vmem:[#allocation2 + $0x50] sm:$0xf]
        %v179 = vld [vmem:[#allocation2 + $0x54] sm:$0xff]
        %v180 = vld [vmem:[#allocation2 + $0x5c] sm:$0xf]
        %v197 = vunpack.c.l.b16 %v165
        %v198 = vunpack.c.h.b16 %v165
        %v199 = vunpack.c.l.b16 %v166
        %v200 = vunpack.c.l.b16 %v167
        %v201 = vunpack.c.h.b16 %v167
        %v202 = vunpack.c.l.b16 %v168
        %v203 = vunpack.c.l.b16 %v169
        %v204 = vunpack.c.h.b16 %v169
        %v205 = vunpack.c.l.b16 %v170
        %v206 = vunpack.c.l.b16 %v171
        %v207 = vunpack.c.h.b16 %v171
        %v208 = vunpack.c.l.b16 %v172
        %v209 = vunpack.c.l.b16 %v173
        %v210 = vunpack.c.h.b16 %v173
        %v211 = vunpack.c.l.b16 %v174
        %v212 = vunpack.c.l.b16 %v175
        %v213 = vunpack.c.h.b16 %v175
        %v214 = vunpack.c.l.b16 %v176
        %v215 = vunpack.c.l.b16 %v177
        %v216 = vunpack.c.h.b16 %v177
        %v217 = vunpack.c.l.b16 %v178
        %v218 = vunpack.c.l.b16 %v179
        %v219 = vunpack.c.h.b16 %v179
        %v220 = vunpack.c.l.b16 %v180
        %v221 = vpack.c.b16 %v200, %v197
        %v222 = vpack.c.b16 %v201, %v198
        %v223 = vpack.c.b16 %v202, %v199
        %v224 = vpack.c.b16 %v206, %v203
        %v225 = vpack.c.b16 %v207, %v204
        %v226 = vpack.c.b16 %v208, %v205
        %v227 = vpack.c.b16 %v212, %v209
        %v228 = vpack.c.b16 %v213, %v210
        %v229 = vpack.c.b16 %v214, %v211
        %v230 = vpack.c.b16 %v218, %v215
        %v231 = vpack.c.b16 %v219, %v216
        %v232 = vpack.c.b16 %v220, %v217
        %vm245 = vcmask 523264
        %v247 = vsel %vm245, %v164, 0
        %249 = vmatprep.subr.bf16.mxu0 %v222
        %250 = vmatpush1.bf16.msra.mxu0 %v221
        %251 = vmatprep.subr.bf16.mxu0 %v225
        %252 = vmatpush1.bf16.msra.mxu0 %v224
        %253 = vmatprep.subr.bf16.mxu0 %v228
        %254 = vmatpush1.bf16.msra.mxu0 %v227
        %255 = vmatprep.subr.bf16.mxu0 %v231
        %256 = vmatpush1.bf16.msra.mxu0 %v230
        %257 = vmatprep.subr.bf16.mxu0 0
        %258 = vmatpush1.bf16.msra.mxu0 0
        %259 = vmatprep.subr.bf16.mxu0 0
        %260 = vmatpush1.bf16.msra.mxu0 0
        %261 = vmatprep.subr.bf16.mxu0 0
        %262 = vmatpush1.bf16.msra.mxu0 0
        %263 = vmatprep.subr.bf16.mxu0 0
        %264 = vmatpush1.bf16.msra.mxu0 0
        %265 = vmatprep.subr.bf16.mxu0 0
        %266 = vmatpush1.bf16.msra.mxu0 0
        %267 = vmatprep.subr.bf16.mxu0 0
        %268 = vmatpush1.bf16.msra.mxu0 0
        %269 = vmatprep.subr.bf16.mxu0 0
        %270 = vmatpush1.bf16.msra.mxu0 0
        %271 = vmatprep.subr.bf16.mxu0 0
        %272 = vmatpush1.bf16.msra.mxu0 0
        %273 = vmatprep.subr.bf16.mxu0 0
        %274 = vmatpush1.bf16.msra.mxu0 0
        %275 = vmatprep.subr.bf16.mxu0 0
        %276 = vmatpush1.bf16.msra.mxu0 0
        %277 = vmatprep.subr.bf16.mxu0 0
        %278 = vmatpush1.bf16.msra.mxu0 0
        %279 = vmatprep.subr.bf16.mxu0 0
        %280 = vmatpush1.bf16.msra.mxu0 0
        %281 = vmatprep.mubr.bf16.mxu0 0
        %282 = vmatmul.mubr.bf16.gmra.mrb[0].mxu0 %v247
        %v283 = vpop.f32.mrb[0].mxu0
        %v284 = vadd.f32 0.0, %v283
        %v285 = vpop.f32.mrb[0].mxu0
        %v286 = vadd.f32 0.0, %v285
        %v287 = vpop.f32.mrb[0].mxu0
        %v288 = vpop.f32.mrb[0].mxu0
        %289 = vdwg.mxu0
        %290 = vmatprep.subr.bf16.mxu0 0
        %291 = vmatpush1.bf16.msra.mxu0 %v223
        %292 = vmatprep.subr.bf16.mxu0 0
        %293 = vmatpush1.bf16.msra.mxu0 %v226
        %294 = vmatprep.subr.bf16.mxu0 0
        %295 = vmatpush1.bf16.msra.mxu0 %v229
        %296 = vmatprep.subr.bf16.mxu0 0
        %297 = vmatpush1.bf16.msra.mxu0 %v232
        %298 = vmatprep.subr.bf16.mxu0 0
        %299 = vmatpush1.bf16.msra.mxu0 0
        %300 = vmatprep.subr.bf16.mxu0 0
        %301 = vmatpush1.bf16.msra.mxu0 0
        %302 = vmatprep.subr.bf16.mxu0 0
        %303 = vmatpush1.bf16.msra.mxu0 0
        %304 = vmatprep.subr.bf16.mxu0 0
        %305 = vmatpush1.bf16.msra.mxu0 0
        %306 = vmatprep.subr.bf16.mxu0 0
        %307 = vmatpush1.bf16.msra.mxu0 0
        %308 = vmatprep.subr.bf16.mxu0 0
        %309 = vmatpush1.bf16.msra.mxu0 0
        %310 = vmatprep.subr.bf16.mxu0 0
        %311 = vmatpush1.bf16.msra.mxu0 0
        %312 = vmatprep.subr.bf16.mxu0 0
        %313 = vmatpush1.bf16.msra.mxu0 0
        %314 = vmatprep.subr.bf16.mxu0 0
        %315 = vmatpush1.bf16.msra.mxu0 0
        %316 = vmatprep.subr.bf16.mxu0 0
        %317 = vmatpush1.bf16.msra.mxu0 0
        %318 = vmatprep.subr.bf16.mxu0 0
        %319 = vmatpush1.bf16.msra.mxu0 0
        %320 = vmatprep.subr.bf16.mxu0 0
        %321 = vmatpush1.bf16.msra.mxu0 0
        %322 = vmatprep.mubr.bf16.mxu0 0
        %323 = vmatmul.mubr.bf16.gmra.mrb[0].mxu0 %v247
        %v324 = vpop.f32.mrb[0].mxu0
        %v325 = vadd.f32 0.0, %v324
        %v326 = vpop.f32.mrb[0].mxu0
        %v327 = vpop.f32.mrb[0].mxu0
        %v328 = vpop.f32.mrb[0].mxu0
        %329 = vdwg.mxu0
        %v330 = vadd.f32 %v284, %v286
        %v331 = vadd.f32 %v330, %v325
        %332 = vst [vmem:[%s149] sm:$0xff] %v331
        %s333 = sand.u32 %s72, 1
        %s334 = scalar_lea.sflag [#allocation4], %s333
        %s335 = sand.u32 %s72, 1
        %s336 = smul.addr %s335, 8
        %s337 = scalar_lea.vmem [#allocation5], %s336
        // Predicated region
        $region33: #{tpu_custom_call.1} parent=27 // pred_check
          %p338 = pneg %p82
        $region34: #{tpu_custom_call.1} parent=27 // pred_check_branch
          %340 = sbr.rel (%p338) target = $region36
        $region35: #{tpu_custom_call.1} parent=27 // pred_region
          %s342 = ssub.s32 128, 128
          %343 = vsyncadd %s334, %s342
          %s344 = smul.addr %s17, 128
          %s345 = scalar_lea.hbm %s2, %s344
          %s347 = sshll.u32 %s337, 4
          %s348 = int_to_ptr.vmem [resolvable:$true] %s347
          %350 = dma.vmem_to_hbm [thread:$0]  %s348, 128, %s345, %s334
        $region36: #{tpu_custom_call.1} parent=27 // pred_fallthru
          _
      $region28: #{tpu_custom_call.1} parent=5 // pred_fallthru
        _
      %p351 = scmp.le.s32.totalorder 2, %s12
      // Predicated region
      $region37: #{tpu_custom_call.1} parent=5 // pred_check
        %p352 = pneg %p351
      $region38: #{tpu_custom_call.1} parent=5 // pred_check_branch
        %354 = sbr.rel (%p352) target = $region40
      $region39: #{tpu_custom_call.1} parent=5 // pred_region
        %s355 = ssub.s32 %s12, 2
        // Predicated region
        $region41: #{tpu_custom_call.1} parent=39 // pred_check
          %p356 = pneg %p88
        $region42: #{tpu_custom_call.1} parent=39 // pred_check_branch
          %358 = sbr.rel (%p356) target = $region44
        $region43: #{tpu_custom_call.1} parent=39 // pred_region
          %s359 = sand.u32 %s73, 1
          %s360 = scalar_lea.sflag [#allocation4], %s359
          %s361 = sand.u32 %s73, 1
          %s362 = smul.addr %s361, 8
          %s363 = scalar_lea.vmem [#allocation5], %s362
          %364 = dma.done %s360, 128
        $region44: #{tpu_custom_call.1} parent=39 // pred_fallthru
          _
      $region40: #{tpu_custom_call.1} parent=5 // pred_fallthru
        _
    $region6: #{tpu_custom_call.1} parent=1 // loop_footer
      %s16 = sadd.s32 1, %s12
    $region7: #{tpu_custom_call.1} parent=1 // loop_footer_branch
      %11 = sbr.rel target = $region3
    $region8: #{tpu_custom_call.1} parent=1 // loop_exit
      _
    %365 = vsyncpa [#allocation3], 1
    %s366 = scalar_lea.sflag [#allocation3], 1
    %367 = vsyncpa %s366, 1
    %368 = vsyncpa [#allocation4], 1
    %s369 = scalar_lea.sflag [#allocation4], 1
    %370 = vsyncpa %s369, 1

// kernel: tpu_custom_call.1
$region0: #{tpu_custom_call.1}
  #allocation0 [shape = 'u32[]', space=smem, size = 0x4, offset = 0x4, fixed_abs, tag = 'smem constant byte address 0x4 - core index']
  #allocation1 [shape = 'u32[144,128]{1,0:T(1,128)}', space=vmem, size = 0x12000, scoped, tag = 'internal scratch']
  %s0 = inlined_call_operand.vmem [shape: s32[16,1], index: 0, kind: input, shape index: {}]
  %s1 = inlined_call_operand.hbm [shape: bf16[64,384], index: 1, kind: input, shape index: {}]
  %s2 = inlined_call_operand.hbm [shape: f32[16,128], index: 2, kind: output, shape index: {}]
  %s3 = sld [smem:[#allocation0]]
  $region45: #{tpu_custom_call.1} parent=0
    _
  %s5 = ssub.s32 1, %s3
  %s6 = scalar_select 0, %s5, %s3
  $region1: #{tpu_custom_call.1} parent=0
    #allocation2 [shape = 'u8[49152]{0}', space=vmem, size = 0xc000, scoped, tag = 'input window, operand 1, single buffered']
    #allocation3 [shape = 's32[2]{0}', space=sflag, size = 0x8, scoped, tag = 'scoped memory for tpu_custom_call.1']
    #allocation4 [shape = 's32[2]{0}', space=sflag, size = 0x8, scoped, tag = 'scoped memory for tpu_custom_call.1']
    #allocation5 [shape = 'u8[8192]{0}', space=vmem, size = 0x2000, scoped, tag = 'output window, operand 0']
    %7 = vsyncpa [#allocation3], 0
    %8 = vsyncpa [#allocation4], 0
    %s9 = scalar_lea.sflag [#allocation4], 1
    %10 = vsyncpa %s9, 0
    loop: start=0, step=1, limit=4
    $region2: #{tpu_custom_call.1} parent=1 // loop_pre_header
      _
    $region3: #{tpu_custom_call.1} parent=1 // loop_header
      %s12 = sphi 0, %s16
      %p13 = scmp.ge.s32.totalorder %s12, 4
      %s22 = sphi 0, %s24
      %s25 = sphi 0, %s22
      %s26 = sphi 0, %s25
      %s42 = sphi 0, %s26
      %s46 = sphi 0, %s46
      %s48 = sphi 0, %s46
      %s49 = sphi 0, %s48
      %s63 = sphi 0, %s49
      %s69 = sphi 0, %s71
      %s72 = sphi 0, %s69
      %s73 = sphi 0, %s72
      %s89 = sphi 0, %s73
    $region4: #{tpu_custom_call.1} parent=1 // loop_header_branch
      %15 = sbr.rel (%p13) target = $region8
    $region5: #{tpu_custom_call.1} parent=1 // loop_body
      %s17 = ssub.s32 %s12, 1
      %s18 = ssub.s32 %s12, 2
      %s19 = sadd.s32 %s12, 1
      %s20 = ssub.s32 %s12, %s19
      %p21 = scmp.eq.s32.totalorder %s20, 0
      %s23 = sadd.s32 %s22, 1
      %s24 = scalar_select %p21, %s22, %s23
      %p27 = pneg %p21
      %p28 = scmp.eq.s32.totalorder %s12, 1
      %p29 = por %p27, %p28
      %p30 = scmp.ne.s32.totalorder %s22, %s25
      %p31 = scmp.eq.s32.totalorder %s12, 0
      %p32 = por %p30, %p31
      %p33 = scmp.ne.s32.totalorder %s22, %s25
      %p34 = scmp.eq.s32.totalorder %s17, 1
      %p35 = por %p33, %p34
      %p36 = scmp.ne.s32.totalorder %s25, %s26
      %p37 = scmp.eq.s32.totalorder %s17, 0
      %p38 = por %p36, %p37
      %p39 = scmp.ne.s32.totalorder %s25, %s26
      %p40 = scmp.eq.s32.totalorder %s18, 1
      %p41 = por %p39, %p40
      %p43 = scmp.ne.s32.totalorder %s26, %s42
      %p44 = scmp.eq.s32.totalorder %s18, 0
      %p45 = por %p43, %p44
      %s47 = sadd.s32 %s46, 1
      %p50 = scmp.eq.s32.totalorder %s12, 1
      %p51 = scmp.ne.s32.totalorder %s46, %s48
      %p52 = scmp.eq.s32.totalorder %s12, 0
      %p53 = por %p51, %p52
      %p54 = scmp.ne.s32.totalorder %s46, %s48
      %p55 = scmp.eq.s32.totalorder %s17, 1
      %p56 = por %p54, %p55
      %p57 = scmp.ne.s32.totalorder %s48, %s49
      %p58 = scmp.eq.s32.totalorder %s17, 0
      %p59 = por %p57, %p58
      %p60 = scmp.ne.s32.totalorder %s48, %s49
      %p61 = scmp.eq.s32.totalorder %s18, 1
      %p62 = por %p60, %p61
      %p64 = scmp.ne.s32.totalorder %s49, %s63
      %p65 = scmp.eq.s32.totalorder %s18, 0
      %p66 = por %p64, %p65
      %s67 = ssub.s32 %s12, %s19
      %p68 = scmp.eq.s32.totalorder %s67, 0
      %s70 = sadd.s32 %s69, 1
      %s71 = scalar_select %p68, %s69, %s70
      %p74 = pneg %p68
      %p75 = scmp.eq.s32.totalorder %s12, 1
      %p76 = por %p74, %p75
      %p77 = scmp.ne.s32.totalorder %s69, %s72
      %p78 = scmp.eq.s32.totalorder %s12, 0
      %p79 = por %p77, %p78
      %p80 = scmp.ne.s32.totalorder %s69, %s72
      %p81 = scmp.eq.s32.totalorder %s17, 1
      %p82 = por %p80, %p81
      %p83 = scmp.ne.s32.totalorder %s72, %s73
      %p84 = scmp.eq.s32.totalorder %s17, 0
      %p85 = por %p83, %p84
      %p86 = scmp.ne.s32.totalorder %s72, %s73
      %p87 = scmp.eq.s32.totalorder %s18, 1
      %p88 = por %p86, %p87
      %p90 = scmp.ne.s32.totalorder %s73, %s89
      %p91 = scmp.eq.s32.totalorder %s18, 0
      %p92 = por %p90, %p91
      %p93 = scmp.le.s32.totalorder 1, %s12
      %p94 = scmp.lt.s32.totalorder %s12, 3
      %p95 = pnand %p93, %p94
      %p96 = pneg %p95
      // Predicated region
      $region9: #{tpu_custom_call.1} parent=5 // pred_check
        _
      $region10: #{tpu_custom_call.1} parent=5 // pred_check_branch
        %98 = sbr.rel (%p95) target = $region12
      $region11: #{tpu_custom_call.1} parent=5 // pred_region
        %s99 = ssub.s32 %s12, 1
        // Predicated region
        $region13: #{tpu_custom_call.1} parent=11 // pred_check
          %p100 = pneg %p59
        $region14: #{tpu_custom_call.1} parent=11 // pred_check_branch
          %102 = sbr.rel (%p100) target = $region16
        $region15: #{tpu_custom_call.1} parent=11 // pred_region
          %s104 = ssub.s32 1536, 1536
          %105 = vsyncadd [#allocation3], %s104
          %s106 = sshll.u32 [#allocation2], 4
          %s107 = int_to_ptr.vmem [resolvable:$true] %s106
          %112 = dma.hbm_to_vmem [thread:$0]  %s1, 1536, %s107, [#allocation3], 192, 192, 12
        $region16: #{tpu_custom_call.1} parent=11 // pred_fallthru
          _
      $region12: #{tpu_custom_call.1} parent=5 // pred_fallthru
        _
      %p113 = scmp.lt.s32.totalorder %s12, 2
      // Predicated region
      $region17: #{tpu_custom_call.1} parent=5 // pred_check
        %p114 = pneg %p113
      $region18: #{tpu_custom_call.1} parent=5 // pred_check_branch
        %116 = sbr.rel (%p114) target = $region20
      $region19: #{tpu_custom_call.1} parent=5 // pred_region
        // Predicated region
        $region21: #{tpu_custom_call.1} parent=19 // pred_check
          %p117 = pneg %p32
        $region22: #{tpu_custom_call.1} parent=19 // pred_check_branch
          %119 = sbr.rel (%p117) target = $region24
        $region23: #{tpu_custom_call.1} parent=19 // pred_region
          %p120 = scmp.lt.s32.totalorder %s12, 1
          %s121 = scalar_select %p120, %s12, 1
          %s122 = smul.addr %s121, 8
          %s123 = scalar_lea.vmem %s0, %s122
        $region24: #{tpu_custom_call.1} parent=19 // pred_fallthru
          _
      $region20: #{tpu_custom_call.1} parent=5 // pred_fallthru
        _
      %p124 = scmp.le.s32.totalorder 1, %s12
      %p125 = scmp.lt.s32.totalorder %s12, 3
      %p126 = pnand %p124, %p125
      %p127 = pneg %p126
      // Predicated region
      $region25: #{tpu_custom_call.1} parent=5 // pred_check
        _
      $region26: #{tpu_custom_call.1} parent=5 // pred_check_branch
        %129 = sbr.rel (%p126) target = $region28
      $region27: #{tpu_custom_call.1} parent=5 // pred_region
        %s130 = ssub.s32 %s12, 1
        // Predicated region
        $region29: #{tpu_custom_call.1} parent=27 // pred_check
          %p131 = pneg %p59
        $region30: #{tpu_custom_call.1} parent=27 // pred_check_branch
          %133 = sbr.rel (%p131) target = $region32
        $region31: #{tpu_custom_call.1} parent=27 // pred_region
          %134 = dma.done [#allocation3], 1536
        $region32: #{tpu_custom_call.1} parent=27 // pred_fallthru
          _
        %p135 = scmp.lt.s32.totalorder %s17, 1
        %s136 = scalar_select %p135, %s17, 1
        %s137 = smul.addr %s136, 8
        %s138 = scalar_lea.vmem %s0, %s137
        %p139 = pneg %p38
        %p140 = pneg %p35
        %p141 = pneg %p59
        %p142 = pneg %p56
        %p143 = pneg %p85
        %p144 = pneg %p82
        %s145 = sand.u32 %s72, 1
        %s146 = scalar_lea.sflag [#allocation4], %s145
        %s147 = sand.u32 %s72, 1
        %s148 = smul.addr %s147, 8
        %s149 = scalar_lea.vmem [#allocation5], %s148
        %p150 = scmp.lt.s32.totalorder %s17, 1
        %s151 = scalar_select %p150, %s17, 1
        %s152 = smul.addr %s151, 8
        %s153 = scalar_lea.vmem %s0, %s152
        %v155 = vld [vmem:[%s153] sm:$0xff]
        %v156 = vlaneseq
        %v157 = vand.u32 %v156, 127
        %158 = vset.pattern.permute.xlu0 0
        %159 = vperm.xlu0 %158, %v155
        %v160 = vpop.permute.xlu0 %159
        %vm161 = vcmp.eq.s32.totalorder %v157, %v160
        %v162 = vsel %vm161, 1, 0
        %v163 = vcvt.s32.f32 %v162
        %v164 = vpack.c.bf16 %v163, %v163
        %v165 = vld [vmem:[#allocation2] sm:$0xff]
        %v166 = vld [vmem:[#allocation2 + $0x8] sm:$0xf]
        %v167 = vld [vmem:[#allocation2 + $0xc] sm:$0xff]
        %v168 = vld [vmem:[#allocation2 + $0x14] sm:$0xf]
        %v169 = vld [vmem:[#allocation2 + $0x18] sm:$0xff]
        %v170 = vld [vmem:[#allocation2 + $0x20] sm:$0xf]
        %v171 = vld [vmem:[#allocation2 + $0x24] sm:$0xff]
        %v172 = vld [vmem:[#allocation2 + $0x2c] sm:$0xf]
        %v173 = vld [vmem:[#allocation2 + $0x30] sm:$0xff]
        %v174 = vld [vmem:[#allocation2 + $0x38] sm:$0xf]
        %v175 = vld [vmem:[#allocation2 + $0x3c] sm:$0xff]
        %v176 = vld [vmem:[#allocation2 + $0x44] sm:$0xf]
        %v177 = vld [vmem:[#allocation2 + $0x48] sm:$0xff]
        %v178 = vld [vmem:[#allocation2 + $0x50] sm:$0xf]
        %v179 = vld [vmem:[#allocation2 + $0x54] sm:$0xff]
        %v180 = vld [vmem:[#allocation2 + $0x5c] sm:$0xf]
        %v197 = vunpack.c.l.b16 %v165
        %v198 = vunpack.c.h.b16 %v165
        %v199 = vunpack.c.l.b16 %v166
        %v200 = vunpack.c.l.b16 %v167
        %v201 = vunpack.c.h.b16 %v167
        %v202 = vunpack.c.l.b16 %v168
        %v203 = vunpack.c.l.b16 %v169
        %v204 = vunpack.c.h.b16 %v169
        %v205 = vunpack.c.l.b16 %v170
        %v206 = vunpack.c.l.b16 %v171
        %v207 = vunpack.c.h.b16 %v171
        %v208 = vunpack.c.l.b16 %v172
        %v209 = vunpack.c.l.b16 %v173
        %v210 = vunpack.c.h.b16 %v173
        %v211 = vunpack.c.l.b16 %v174
        %v212 = vunpack.c.l.b16 %v175
        %v213 = vunpack.c.h.b16 %v175
        %v214 = vunpack.c.l.b16 %v176
        %v215 = vunpack.c.l.b16 %v177
        %v216 = vunpack.c.h.b16 %v177
        %v217 = vunpack.c.l.b16 %v178
        %v218 = vunpack.c.l.b16 %v179
        %v219 = vunpack.c.h.b16 %v179
        %v220 = vunpack.c.l.b16 %v180
        %v221 = vpack.c.b16 %v200, %v197
        %v222 = vpack.c.b16 %v201, %v198
        %v223 = vpack.c.b16 %v202, %v199
        %v224 = vpack.c.b16 %v206, %v203
        %v225 = vpack.c.b16 %v207, %v204
        %v226 = vpack.c.b16 %v208, %v205
        %v227 = vpack.c.b16 %v212, %v209
        %v228 = vpack.c.b16 %v213, %v210
        %v229 = vpack.c.b16 %v214, %v211
        %v230 = vpack.c.b16 %v218, %v215
        %v231 = vpack.c.b16 %v219, %v216
        %v232 = vpack.c.b16 %v220, %v217
        %vm245 = vcmask 523264
        %v247 = vsel %vm245, %v164, 0
        %249 = vmatprep.subr.bf16.mxu0 %v222
        %250 = vmatpush1.bf16.msra.mxu0 %v221
        %251 = vmatprep.subr.bf16.mxu0 %v225
        %252 = vmatpush1.bf16.msra.mxu0 %v224
        %253 = vmatprep.subr.bf16.mxu0 %v228
        %254 = vmatpush1.bf16.msra.mxu0 %v227
        %255 = vmatprep.subr.bf16.mxu0 %v231
        %256 = vmatpush1.bf16.msra.mxu0 %v230
        %257 = vmatprep.subr.bf16.mxu0 0
        %258 = vmatpush1.bf16.msra.mxu0 0
        %259 = vmatprep.subr.bf16.mxu0 0
        %260 = vmatpush1.bf16.msra.mxu0 0
        %261 = vmatprep.subr.bf16.mxu0 0
        %262 = vmatpush1.bf16.msra.mxu0 0
        %263 = vmatprep.subr.bf16.mxu0 0
        %264 = vmatpush1.bf16.msra.mxu0 0
        %265 = vmatprep.subr.bf16.mxu0 0
        %266 = vmatpush1.bf16.msra.mxu0 0
        %267 = vmatprep.subr.bf16.mxu0 0
        %268 = vmatpush1.bf16.msra.mxu0 0
        %269 = vmatprep.subr.bf16.mxu0 0
        %270 = vmatpush1.bf16.msra.mxu0 0
        %271 = vmatprep.subr.bf16.mxu0 0
        %272 = vmatpush1.bf16.msra.mxu0 0
        %273 = vmatprep.subr.bf16.mxu0 0
        %274 = vmatpush1.bf16.msra.mxu0 0
        %275 = vmatprep.subr.bf16.mxu0 0
        %276 = vmatpush1.bf16.msra.mxu0 0
        %277 = vmatprep.subr.bf16.mxu0 0
        %278 = vmatpush1.bf16.msra.mxu0 0
        %279 = vmatprep.subr.bf16.mxu0 0
        %280 = vmatpush1.bf16.msra.mxu0 0
        %281 = vmatprep.mubr.bf16.mxu0 0
        %282 = vmatmul.mubr.bf16.gmra.mrb[0].mxu0 %v247
        %v283 = vpop.f32.mrb[0].mxu0
        %v284 = vadd.f32 0.0, %v283
        %v285 = vpop.f32.mrb[0].mxu0
        %v286 = vadd.f32 0.0, %v285
        %v287 = vpop.f32.mrb[0].mxu0
        %v288 = vpop.f32.mrb[0].mxu0
        %289 = vdwg.mxu0
        %290 = vmatprep.subr.bf16.mxu0 0
        %291 = vmatpush1.bf16.msra.mxu0 %v223
        %292 = vmatprep.subr.bf16.mxu0 0
        %293 = vmatpush1.bf16.msra.mxu0 %v226
        %294 = vmatprep.subr.bf16.mxu0 0
        %295 = vmatpush1.bf16.msra.mxu0 %v229
        %296 = vmatprep.subr.bf16.mxu0 0
        %297 = vmatpush1.bf16.msra.mxu0 %v232
        %298 = vmatprep.subr.bf16.mxu0 0
        %299 = vmatpush1.bf16.msra.mxu0 0
        %300 = vmatprep.subr.bf16.mxu0 0
        %301 = vmatpush1.bf16.msra.mxu0 0
        %302 = vmatprep.subr.bf16.mxu0 0
        %303 = vmatpush1.bf16.msra.mxu0 0
        %304 = vmatprep.subr.bf16.mxu0 0
        %305 = vmatpush1.bf16.msra.mxu0 0
        %306 = vmatprep.subr.bf16.mxu0 0
        %307 = vmatpush1.bf16.msra.mxu0 0
        %308 = vmatprep.subr.bf16.mxu0 0
        %309 = vmatpush1.bf16.msra.mxu0 0
        %310 = vmatprep.subr.bf16.mxu0 0
        %311 = vmatpush1.bf16.msra.mxu0 0
        %312 = vmatprep.subr.bf16.mxu0 0
        %313 = vmatpush1.bf16.msra.mxu0 0
        %314 = vmatprep.subr.bf16.mxu0 0
        %315 = vmatpush1.bf16.msra.mxu0 0
        %316 = vmatprep.subr.bf16.mxu0 0
        %317 = vmatpush1.bf16.msra.mxu0 0
        %318 = vmatprep.subr.bf16.mxu0 0
        %319 = vmatpush1.bf16.msra.mxu0 0
        %320 = vmatprep.subr.bf16.mxu0 0
        %321 = vmatpush1.bf16.msra.mxu0 0
        %322 = vmatprep.mubr.bf16.mxu0 0
        %323 = vmatmul.mubr.bf16.gmra.mrb[0].mxu0 %v247
        %v324 = vpop.f32.mrb[0].mxu0
        %v325 = vadd.f32 0.0, %v324
        %v326 = vpop.f32.mrb[0].mxu0
        %v327 = vpop.f32.mrb[0].mxu0
        %v328 = vpop.f32.mrb[0].mxu0
        %329 = vdwg.mxu0
        %v330 = vadd.f32 %v284, %v286
        %v331 = vadd.f32 %v330, %v325
        %332 = vst [vmem:[%s149] sm:$0xff] %v331
        %s333 = sand.u32 %s72, 1
        %s334 = scalar_lea.sflag [#allocation4], %s333
        %s335 = sand.u32 %s72, 1
        %s336 = smul.addr %s335, 8
        %s337 = scalar_lea.vmem [#allocation5], %s336
        // Predicated region
        $region33: #{tpu_custom_call.1} parent=27 // pred_check
          %p338 = pneg %p82
        $region34: #{tpu_custom_call.1} parent=27 // pred_check_branch
          %340 = sbr.rel (%p338) target = $region36
        $region35: #{tpu_custom_call.1} parent=27 // pred_region
          %s342 = ssub.s32 128, 128
          %343 = vsyncadd %s334, %s342
          %s344 = smul.addr %s17, 128
          %s345 = scalar_lea.hbm %s2, %s344
          %s347 = sshll.u32 %s337, 4
          %s348 = int_to_ptr.vmem [resolvable:$true] %s347
          %350 = dma.vmem_to_hbm [thread:$0]  %s348, 128, %s345, %s334
        $region36: #{tpu_custom_call.1} parent=27 // pred_fallthru
          _
      $region28: #{tpu_custom_call.1} parent=5 // pred_fallthru
        _
      %p351 = scmp.le.s32.totalorder 2, %s12
      // Predicated region
      $region37: #{tpu_custom_call.1} parent=5 // pred_check
        %p352 = pneg %p351
      $region38: #{tpu_custom_call.1} parent=5 // pred_check_branch
        %354 = sbr.rel (%p352) target = $region40
      $region39: #{tpu_custom_call.1} parent=5 // pred_region
        %s355 = ssub.s32 %s12, 2
        // Predicated region
        $region41: #{tpu_custom_call.1} parent=39 // pred_check
          %p356 = pneg %p88
        $region42: #{tpu_custom_call.1} parent=39 // pred_check_branch
          %358 = sbr.rel (%p356) target = $region44
        $region43: #{tpu_custom_call.1} parent=39 // pred_region
          %s359 = sand.u32 %s73, 1
          %s360 = scalar_lea.sflag [#allocation4], %s359
          %s361 = sand.u32 %s73, 1
          %s362 = smul.addr %s361, 8
          %s363 = scalar_lea.vmem [#allocation5], %s362
          %364 = dma.done %s360, 128
        $region44: #{tpu_custom_call.1} parent=39 // pred_fallthru
          _
      $region40: #{tpu_custom_call.1} parent=5 // pred_fallthru
        _
    $region6: #{tpu_custom_call.1} parent=1 // loop_footer
      %s16 = sadd.s32 1, %s12
    $region7: #{tpu_custom_call.1} parent=1 // loop_footer_branch
      %11 = sbr.rel target = $region3
    $region8: #{tpu_custom_call.1} parent=1 // loop_exit
      _
    %365 = vsyncpa [#allocation3], 1
    %s366 = scalar_lea.sflag [#allocation3], 1
    %367 = vsyncpa %s366, 1
    %368 = vsyncpa [#allocation4], 1
    %s369 = scalar_lea.sflag [#allocation4], 1
    %370 = vsyncpa %s369, 1

</llo_original>
